<compile_context>
chip_gen: v6e
topology: v6e:2x2x1
jax: 0.10.0
libtpu: 0.0.40
codegen_flags: <defaults>
</compile_context>

<pallas_src>
import jax
import jax.numpy as jnp
from jax.experimental import pallas as pl
from jax.experimental.pallas import tpu as pltpu


# --------------------------------------------------------------------------- kernel ----
def d_net_gauss_kernel(x_ref, w1_ref, b1_ref, w2_ref, b2_ref, w3_ref, b3_ref, o_ref):
    # lin1 -> (dropout = id) -> relu.  bf16 MXU operands, f32 accumulate.
    x = x_ref[...]
    if x.dtype != jnp.bfloat16:          # accept bf16 x directly; cast only if f32 arrived
        x = x.astype(jnp.bfloat16)
    h1 = jnp.dot(x, w1_ref[...], preferred_element_type=jnp.float32) + b1_ref[...]
    h1 = jnp.maximum(h1, 0.0)

    # lin2 -> (dropout = id) -> relu.
    h2 = jnp.dot(h1.astype(jnp.bfloat16), w2_ref[...],
                 preferred_element_type=jnp.float32) + b2_ref[...]
    h2 = jnp.maximum(h2, 0.0)

    # lin3 -> sigmoid.  1-wide output: VPU multiply + XLU lane reduction (w3 is a (1, N)
    # row, exactly lin3.weight's layout) rides in otherwise-free slots under lin2's MXU work.
    logits = jnp.sum(h2 * w3_ref[...], axis=-1, keepdims=True) + b3_ref[...]
    o_ref[...] = jax.nn.sigmoid(logits)


# ------------------------------------------------------------------------- wrapper ----
def _choose_tm(B):
    """Batch-tile heuristic (review items 1, 5, 9)."""
    if B <= 8:
        return B                                    # too small to split; single step
    if B <= 2048:
        # two grid steps: both v7x TensorCores get work; ~0.35us extra elsewhere.
        return max(8, ((B + 15) // 16) * 8)         # ceil(B/2) rounded up to 8 sublanes
    # large batch: 1024-row tiles (>= measured 512-row sweet spot, VMEM-safe on v7x/v5e).
    return 1024


def _vmem_limit_bytes(tm, z_dim, n, x_itemsize):
    """Explicit scoped-VMEM limit with headroom (review item 3).  Never above 64 MiB so the
    limit stays legal on v7x (64 MiB physical); raises v5e's 16 MiB default when needed."""
    x_tiles = 2 * tm * z_dim * x_itemsize                    # double-buffered x tile
    out_tiles = 2 * tm * 1 * 4
    weights = (z_dim * n + n * n) * 2 + (3 * n + 1) * 4      # bf16 w1/w2 + f32 b1/b2/w3/b3
    acts = 2 * tm * n * 4                                    # h1 + h2 live f32 values
    est = x_tiles + out_tiles + 2 * weights + acts           # 2x weights: double-buffer fallback
    return int(min(max(2 * est, 32 * 1024 * 1024), 64 * 1024 * 1024))


def d_net_gauss_forward(x, params, *, tm=None):
    """x: (B, z_dim) float32 or bfloat16.  params: see prepare_params()."""
    B, z_dim = x.shape
    w1, b1 = params["w1"], params["b1"]   # (z_dim, Np) bf16, (1, Np) f32
    w2, b2 = params["w2"], params["b2"]   # (Np, Np)    bf16, (1, Np) f32
    w3, b3 = params["w3"], params["b3"]   # (1, Np)     f32,  (1, 1)  f32
    N = w1.shape[1]

    if tm is None:
        tm = _choose_tm(B)
    tm = min(tm, B)
    if tm < B and tm % 8 != 0:            # sublane alignment unless tile covers whole batch
        tm = max(8, (tm // 8) * 8)
    grid = (pl.cdiv(B, tm),)

    vmem_limit = _vmem_limit_bytes(tm, z_dim, N, x.dtype.itemsize)

    flops = 2 * B * (z_dim * N + N * N + N)
    bytes_accessed = int(
        x.size * x.dtype.itemsize
        + sum(int(p.size) * p.dtype.itemsize for p in params.values())
        + B * 4)

    def build(single_buffer_weights):
        w_kwargs = dict(pipeline_mode=pl.Buffered(1)) if single_buffer_weights else {}

        def resident(a):
            return pl.BlockSpec(a.shape, lambda *_: (0,) * a.ndim, **w_kwargs)

        return pl.pallas_call(
            d_net_gauss_kernel,
            out_shape=jax.ShapeDtypeStruct((B, 1), jnp.float32),
            grid=grid,
            in_specs=[
                pl.BlockSpec((tm, z_dim), lambda i: (i, 0)),   # x tiled along batch
                resident(w1), resident(b1),                    # weights resident in VMEM
                resident(w2), resident(b2),
                resident(w3), resident(b3),
            ],
            out_specs=pl.BlockSpec((tm, 1), lambda i: (i, 0)),
            compiler_params=pltpu.CompilerParams(
                dimension_semantics=("parallel",),
                vmem_limit_bytes=vmem_limit),
            cost_estimate=pl.CostEstimate(
                flops=flops, transcendentals=B, bytes_accessed=bytes_accessed),
        )

    try:
        # Single-buffer the constant-index weight blocks (review item 6): halves their VMEM
        # footprint, which buys batch-tile headroom on v7x's 64 MiB VMEM.
        return build(single_buffer_weights=True)(x, w1, b1, w2, b2, w3, b3)
    except Exception:
        # Fallback for jax versions whose pallas_call lowering rejects pipeline_mode on
        # BlockSpecs; functionally identical (weights just keep the default 2 buffers).
        return build(single_buffer_weights=False)(x, w1, b1, w2, b2, w3, b3)


# ---------------------------------------------------------------------- parameters ----
def init_params(key, z_dim, N):
    """nn.Linear default init U(-1/sqrt(fan_in), +1/sqrt(fan_in)), PyTorch layout:
    weight (out, in), bias (out,).  Kept in f32 for the semantic reference."""
    keys = jax.random.split(key, 6)

    def lin(kw, kb, fan_in, fan_out):
        bound = 1.0 / (fan_in ** 0.5)
        w = jax.random.uniform(kw, (fan_out, fan_in), jnp.float32, -bound, bound)
        b = jax.random.uniform(kb, (fan_out,), jnp.float32, -bound, bound)
        return w, b

    w1, b1 = lin(keys[0], keys[1], z_dim, N)
    w2, b2 = lin(keys[2], keys[3], N, N)
    w3, b3 = lin(keys[4], keys[5], N, 1)
    return {"lin1.w": w1, "lin1.b": b1,
            "lin2.w": w2, "lin2.b": b2,
            "lin3.w": w3, "lin3.b": b3}


def prepare_params(raw, *, lane_multiple=128):
    """Pack PyTorch-layout f32 params into the kernel layout:
       - transpose w1/w2 to (in, out) and cast to bf16 for the MXU,
       - zero-pad the hidden width N up to a lane multiple (128) — padded columns carry
         zero weight and zero bias so results are identical to the unpadded math,
       - keep w3 as a (1, N_pad) f32 row (lin3.weight layout) for the VPU/XLU reduce path."""
    N, z_dim = raw["lin1.w"].shape
    n_pad = ((N + lane_multiple - 1) // lane_multiple) * lane_multiple
    pc = n_pad - N

    def pad_last(a):
        return jnp.pad(a, [(0, 0)] * (a.ndim - 1) + [(0, pc)])

    w1 = pad_last(raw["lin1.w"].T)                           # (z_dim, N_pad)
    b1 = pad_last(raw["lin1.b"][None, :])                    # (1, N_pad)
    w2 = jnp.pad(raw["lin2.w"].T, ((0, pc), (0, pc)))        # (N_pad, N_pad)
    b2 = pad_last(raw["lin2.b"][None, :])                    # (1, N_pad)
    w3 = pad_last(raw["lin3.w"])                             # (1, N_pad)
    b3 = raw["lin3.b"][None, :]                              # (1, 1)
    return {"w1": w1.astype(jnp.bfloat16), "b1": b1,
            "w2": w2.astype(jnp.bfloat16), "b2": b2,
            "w3": w3, "b3": b3}


# ---------------------------------------------------------------------- references ----
def reference_forward_matched(x, kp):
    """Pure-JAX reference mirroring the kernel's bf16-operand / f32-accumulate math."""
    xb = x if x.dtype == jnp.bfloat16 else x.astype(jnp.bfloat16)
    h1 = jnp.maximum(jnp.dot(xb, kp["w1"], preferred_element_type=jnp.float32) + kp["b1"], 0.0)
    h2 = jnp.maximum(jnp.dot(h1.astype(jnp.bfloat16), kp["w2"],
                             preferred_element_type=jnp.float32) + kp["b2"], 0.0)
    logits = jnp.sum(h2 * kp["w3"], axis=-1, keepdims=True) + kp["b3"]
    return jax.nn.sigmoid(logits)


def reference_forward_f32(x, raw):
    """Pure-f32 PyTorch-semantics reference (eval-mode dropout = identity)."""
    x = x.astype(jnp.float32)
    h1 = jnp.maximum(x @ raw["lin1.w"].T + raw["lin1.b"], 0.0)
    h2 = jnp.maximum(h1 @ raw["lin2.w"].T + raw["lin2.b"], 0.0)
    return jax.nn.sigmoid(h2 @ raw["lin3.w"].T + raw["lin3.b"])


# --------------------------------------------------------------------------- main -----
if __name__ == "__main__":
    # Small shapes consistent with the module.  N=100 exercises the lane padding (100->128);
    # B=64 auto-selects TM=32 -> grid=(2,) so the v7x two-TensorCore split path is covered.
    B, z_dim, N = 64, 32, 100

    key = jax.random.PRNGKey(0)
    kx, kp = jax.random.split(key)
    x = jax.random.normal(kx, (B, z_dim), dtype=jnp.float32)

    raw = init_params(kp, z_dim, N)        # PyTorch-layout f32 params (semantic reference)
    kparams = prepare_params(raw)          # kernel layout: transposed, lane-padded, bf16

    out = jax.block_until_ready(d_net_gauss_forward(x, kparams))
    assert out.shape == (B, 1), out.shape

    # Tight check against a reference doing the exact same bf16/f32 math.
    ref_matched = reference_forward_matched(x, kparams)
    assert jnp.allclose(out, ref_matched, atol=1e-4, rtol=1e-4), "mismatch vs matched ref"

    # Loose check against the full-f32 PyTorch semantics (bf16 operands -> ~1e-3 error).
    ref_f32 = reference_forward_f32(x, raw)
    assert jnp.allclose(out, ref_f32, atol=2e-2, rtol=0.0), "mismatch vs f32 reference"

    # bf16-activation path (upstream encoder emits bf16): same kernel, no extra cast op.
    out_bf16 = jax.block_until_ready(d_net_gauss_forward(x.astype(jnp.bfloat16), kparams))
    assert out_bf16.shape == (B, 1)
    assert jnp.allclose(out_bf16, ref_f32, atol=3e-2, rtol=0.0), "mismatch (bf16 x path)"

    print("KERNEL_OK")
</pallas_src>

<mosaic_0001>
module attributes {stable_mosaic.version = 11 : i64} {
  func.func @d_net_gauss_kernel(%arg0: i32, %arg1: memref<32x32xf32, #tpu.memory_space<vmem>>, %arg2: memref<32x128xbf16, #tpu.memory_space<vmem>>, %arg3: memref<1x128xf32, #tpu.memory_space<vmem>>, %arg4: memref<128x128xbf16, #tpu.memory_space<vmem>>, %arg5: memref<1x128xf32, #tpu.memory_space<vmem>>, %arg6: memref<1x128xf32, #tpu.memory_space<vmem>>, %arg7: memref<1x1xf32, #tpu.memory_space<vmem>>, %arg8: memref<32x1xf32, #tpu.memory_space<vmem>>) attributes {dimension_semantics = [#tpu.dimension_semantics<parallel>], iteration_bounds = array<i64: 2>, scalar_prefetch = 0 : i64, scratch_operands = 0 : i64, tpu.core_type = #tpu.core_type<tc>, window_params = [{transform_indices = @transform_0, window_bounds = array<i64: 32, 32>}, {pipeline_mode = #tpu.pipeline_mode<synchronous>, transform_indices = @transform_1, window_bounds = array<i64: 32, 128>}, {pipeline_mode = #tpu.pipeline_mode<synchronous>, transform_indices = @transform_2, window_bounds = array<i64: 1, 128>}, {pipeline_mode = #tpu.pipeline_mode<synchronous>, transform_indices = @transform_3, window_bounds = array<i64: 128, 128>}, {pipeline_mode = #tpu.pipeline_mode<synchronous>, transform_indices = @transform_4, window_bounds = array<i64: 1, 128>}, {pipeline_mode = #tpu.pipeline_mode<synchronous>, transform_indices = @transform_5, window_bounds = array<i64: 1, 128>}, {pipeline_mode = #tpu.pipeline_mode<synchronous>, transform_indices = @transform_6, window_bounds = array<i64: 1, 1>}, {transform_indices = @transform_7, window_bounds = array<i64: 32, 1>}]} {
    %c0 = arith.constant 0 : index
    %c0_0 = arith.constant 0 : index
    %0 = vector.load %arg1[%c0, %c0_0] : memref<32x32xf32, #tpu.memory_space<vmem>>, vector<32x32xf32>
    %1 = arith.truncf %0 : vector<32x32xf32> to vector<32x32xbf16>
    %c0_1 = arith.constant 0 : index
    %c0_2 = arith.constant 0 : index
    %2 = vector.load %arg2[%c0_1, %c0_2] : memref<32x128xbf16, #tpu.memory_space<vmem>>, vector<32x128xbf16>
    %cst = arith.constant dense<0.000000e+00> : vector<32x128xf32>
    %3 = tpu.matmul %1, %2, %cst {dimension_numbers = #tpu.dot_dimension_numbers<[1], [0], [0], [1], [0, 0, 1, 1], [], []>} : vector<32x32xbf16>, vector<32x128xbf16>, vector<32x128xf32> -> vector<32x128xf32>
    %c0_3 = arith.constant 0 : index
    %c0_4 = arith.constant 0 : index
    %4 = vector.load %arg3[%c0_3, %c0_4] : memref<1x128xf32, #tpu.memory_space<vmem>>, vector<1x128xf32>
    %5 = vector.broadcast %4 : vector<1x128xf32> to vector<32x128xf32>
    %6 = arith.addf %3, %5 : vector<32x128xf32>
    %cst_5 = arith.constant 0.000000e+00 : f32
    %7 = vector.broadcast %cst_5 : f32 to vector<32x128xf32>
    %8 = arith.maximumf %6, %7 : vector<32x128xf32>
    %9 = arith.truncf %8 : vector<32x128xf32> to vector<32x128xbf16>
    %c0_6 = arith.constant 0 : index
    %c0_7 = arith.constant 0 : index
    %10 = vector.load %arg4[%c0_6, %c0_7] : memref<128x128xbf16, #tpu.memory_space<vmem>>, vector<128x128xbf16>
    %cst_8 = arith.constant dense<0.000000e+00> : vector<32x128xf32>
    %11 = tpu.matmul %9, %10, %cst_8 {dimension_numbers = #tpu.dot_dimension_numbers<[1], [0], [0], [1], [0, 0, 1, 1], [], []>} : vector<32x128xbf16>, vector<128x128xbf16>, vector<32x128xf32> -> vector<32x128xf32>
    %c0_9 = arith.constant 0 : index
    %c0_10 = arith.constant 0 : index
    %12 = vector.load %arg5[%c0_9, %c0_10] : memref<1x128xf32, #tpu.memory_space<vmem>>, vector<1x128xf32>
    %13 = vector.broadcast %12 : vector<1x128xf32> to vector<32x128xf32>
    %14 = arith.addf %11, %13 : vector<32x128xf32>
    %cst_11 = arith.constant 0.000000e+00 : f32
    %15 = vector.broadcast %cst_11 : f32 to vector<32x128xf32>
    %16 = arith.maximumf %14, %15 : vector<32x128xf32>
    %c0_12 = arith.constant 0 : index
    %c0_13 = arith.constant 0 : index
    %17 = vector.load %arg6[%c0_12, %c0_13] : memref<1x128xf32, #tpu.memory_space<vmem>>, vector<1x128xf32>
    %18 = vector.broadcast %17 : vector<1x128xf32> to vector<32x128xf32>
    %19 = arith.mulf %16, %18 : vector<32x128xf32>
    %cst_14 = arith.constant dense<0.000000e+00> : vector<32xf32>
    %20 = vector.multi_reduction <add>, %19, %cst_14 [1] : vector<32x128xf32> to vector<32xf32>
    %21 = vector.shape_cast %20 : vector<32xf32> to vector<32x1xf32>
    %c0_15 = arith.constant 0 : index
    %c0_16 = arith.constant 0 : index
    %22 = vector.load %arg7[%c0_15, %c0_16] : memref<1x1xf32, #tpu.memory_space<vmem>>, vector<1x1xf32>
    %23 = vector.broadcast %22 : vector<1x1xf32> to vector<32x1xf32>
    %24 = arith.addf %21, %23 : vector<32x1xf32>
    %25 = arith.negf %24 : vector<32x1xf32>
    %26 = math.exp %25 : vector<32x1xf32>
    %cst_17 = arith.constant 1.000000e+00 : f32
    %27 = vector.broadcast %cst_17 : f32 to vector<32x1xf32>
    %28 = arith.addf %27, %26 : vector<32x1xf32>
    %29 = arith.divf %27, %28 : vector<32x1xf32>
    %c0_18 = arith.constant 0 : index
    %c0_19 = arith.constant 0 : index
    %30 = vector.load %arg8[%c0_18, %c0_19] : memref<32x1xf32, #tpu.memory_space<vmem>>, vector<32x1xf32>
    tpu.vector_store %arg8[%c0_18, %c0_19], %29 {strides = array<i32>} : memref<32x1xf32, #tpu.memory_space<vmem>>, vector<32x1xf32>,
    return
  }
  func.func @transform_0(%arg0: i32) -> (i32, i32) {
    %c0_i32 = arith.constant 0 : i32
    %c0_i32_0 = arith.constant 0 : i32
    return %arg0, %c0_i32 : i32, i32
  }
  func.func @transform_1(%arg0: i32) -> (i32, i32) {
    %c0_i32 = arith.constant 0 : i32
    %c0_i32_0 = arith.constant 0 : i32
    %c0_i32_1 = arith.constant 0 : i32
    return %c0_i32, %c0_i32_0 : i32, i32
  }
  func.func @transform_2(%arg0: i32) -> (i32, i32) {
    %c0_i32 = arith.constant 0 : i32
    %c0_i32_0 = arith.constant 0 : i32
    %c0_i32_1 = arith.constant 0 : i32
    return %c0_i32, %c0_i32_0 : i32, i32
  }
  func.func @transform_3(%arg0: i32) -> (i32, i32) {
    %c0_i32 = arith.constant 0 : i32
    %c0_i32_0 = arith.constant 0 : i32
    %c0_i32_1 = arith.constant 0 : i32
    return %c0_i32, %c0_i32_0 : i32, i32
  }
  func.func @transform_4(%arg0: i32) -> (i32, i32) {
    %c0_i32 = arith.constant 0 : i32
    %c0_i32_0 = arith.constant 0 : i32
    %c0_i32_1 = arith.constant 0 : i32
    return %c0_i32, %c0_i32_0 : i32, i32
  }
  func.func @transform_5(%arg0: i32) -> (i32, i32) {
    %c0_i32 = arith.constant 0 : i32
    %c0_i32_0 = arith.constant 0 : i32
    %c0_i32_1 = arith.constant 0 : i32
    return %c0_i32, %c0_i32_0 : i32, i32
  }
  func.func @transform_6(%arg0: i32) -> (i32, i32) {
    %c0_i32 = arith.constant 0 : i32
    %c0_i32_0 = arith.constant 0 : i32
    %c0_i32_1 = arith.constant 0 : i32
    return %c0_i32, %c0_i32_0 : i32, i32
  }
  func.func @transform_7(%arg0: i32) -> (i32, i32) {
    %c0_i32 = arith.constant 0 : i32
    %c0_i32_0 = arith.constant 0 : i32
    return %arg0, %c0_i32 : i32, i32
  }
}

module attributes {stable_mosaic.version = 11 : i64} {
  func.func @d_net_gauss_kernel(%arg0: i32, %arg1: memref<32x32xf32, #tpu.memory_space<vmem>>, %arg2: memref<32x128xbf16, #tpu.memory_space<vmem>>, %arg3: memref<1x128xf32, #tpu.memory_space<vmem>>, %arg4: memref<128x128xbf16, #tpu.memory_space<vmem>>, %arg5: memref<1x128xf32, #tpu.memory_space<vmem>>, %arg6: memref<1x128xf32, #tpu.memory_space<vmem>>, %arg7: memref<1x1xf32, #tpu.memory_space<vmem>>, %arg8: memref<32x1xf32, #tpu.memory_space<vmem>>) attributes {dimension_semantics = [#tpu.dimension_semantics<parallel>], iteration_bounds = array<i64: 2>, scalar_prefetch = 0 : i64, scratch_operands = 0 : i64, tpu.core_type = #tpu.core_type<tc>, window_params = [{transform_indices = @transform_0, window_bounds = array<i64: 32, 32>}, {pipeline_mode = #tpu.pipeline_mode<synchronous>, transform_indices = @transform_1, window_bounds = array<i64: 32, 128>}, {pipeline_mode = #tpu.pipeline_mode<synchronous>, transform_indices = @transform_2, window_bounds = array<i64: 1, 128>}, {pipeline_mode = #tpu.pipeline_mode<synchronous>, transform_indices = @transform_3, window_bounds = array<i64: 128, 128>}, {pipeline_mode = #tpu.pipeline_mode<synchronous>, transform_indices = @transform_4, window_bounds = array<i64: 1, 128>}, {pipeline_mode = #tpu.pipeline_mode<synchronous>, transform_indices = @transform_5, window_bounds = array<i64: 1, 128>}, {pipeline_mode = #tpu.pipeline_mode<synchronous>, transform_indices = @transform_6, window_bounds = array<i64: 1, 1>}, {transform_indices = @transform_7, window_bounds = array<i64: 32, 1>}]} {
    %c0 = arith.constant 0 : index
    %c0_0 = arith.constant 0 : index
    %0 = vector.load %arg1[%c0, %c0_0] : memref<32x32xf32, #tpu.memory_space<vmem>>, vector<32x32xf32>
    %1 = arith.truncf %0 : vector<32x32xf32> to vector<32x32xbf16>
    %c0_1 = arith.constant 0 : index
    %c0_2 = arith.constant 0 : index
    %2 = vector.load %arg2[%c0_1, %c0_2] : memref<32x128xbf16, #tpu.memory_space<vmem>>, vector<32x128xbf16>
    %cst = arith.constant dense<0.000000e+00> : vector<32x128xf32>
    %3 = tpu.matmul %1, %2, %cst {dimension_numbers = #tpu.dot_dimension_numbers<[1], [0], [0], [1], [0, 0, 1, 1], [], []>} : vector<32x32xbf16>, vector<32x128xbf16>, vector<32x128xf32> -> vector<32x128xf32>
    %c0_3 = arith.constant 0 : index
    %c0_4 = arith.constant 0 : index
    %4 = vector.load %arg3[%c0_3, %c0_4] : memref<1x128xf32, #tpu.memory_space<vmem>>, vector<1x128xf32>
    %5 = vector.broadcast %4 : vector<1x128xf32> to vector<32x128xf32>
    %6 = arith.addf %3, %5 : vector<32x128xf32>
    %cst_5 = arith.constant 0.000000e+00 : f32
    %7 = vector.broadcast %cst_5 : f32 to vector<32x128xf32>
    %8 = arith.maximumf %6, %7 : vector<32x128xf32>
    %9 = arith.truncf %8 : vector<32x128xf32> to vector<32x128xbf16>
    %c0_6 = arith.constant 0 : index
    %c0_7 = arith.constant 0 : index
    %10 = vector.load %arg4[%c0_6, %c0_7] : memref<128x128xbf16, #tpu.memory_space<vmem>>, vector<128x128xbf16>
    %cst_8 = arith.constant dense<0.000000e+00> : vector<32x128xf32>
    %11 = tpu.matmul %9, %10, %cst_8 {dimension_numbers = #tpu.dot_dimension_numbers<[1], [0], [0], [1], [0, 0, 1, 1], [], []>} : vector<32x128xbf16>, vector<128x128xbf16>, vector<32x128xf32> -> vector<32x128xf32>
    %c0_9 = arith.constant 0 : index
    %c0_10 = arith.constant 0 : index
    %12 = vector.load %arg5[%c0_9, %c0_10] : memref<1x128xf32, #tpu.memory_space<vmem>>, vector<1x128xf32>
    %13 = vector.broadcast %12 : vector<1x128xf32> to vector<32x128xf32>
    %14 = arith.addf %11, %13 : vector<32x128xf32>
    %cst_11 = arith.constant 0.000000e+00 : f32
    %15 = vector.broadcast %cst_11 : f32 to vector<32x128xf32>
    %16 = arith.maximumf %14, %15 : vector<32x128xf32>
    %c0_12 = arith.constant 0 : index
    %c0_13 = arith.constant 0 : index
    %17 = vector.load %arg6[%c0_12, %c0_13] : memref<1x128xf32, #tpu.memory_space<vmem>>, vector<1x128xf32>
    %18 = vector.broadcast %17 : vector<1x128xf32> to vector<32x128xf32>
    %19 = arith.mulf %16, %18 : vector<32x128xf32>
    %cst_14 = arith.constant dense<0.000000e+00> : vector<32xf32>
    %20 = vector.multi_reduction <add>, %19, %cst_14 [1] : vector<32x128xf32> to vector<32xf32>
    %21 = vector.shape_cast %20 : vector<32xf32> to vector<32x1xf32>
    %c0_15 = arith.constant 0 : index
    %c0_16 = arith.constant 0 : index
    %22 = vector.load %arg7[%c0_15, %c0_16] : memref<1x1xf32, #tpu.memory_space<vmem>>, vector<1x1xf32>
    %23 = vector.broadcast %22 : vector<1x1xf32> to vector<32x1xf32>
    %24 = arith.addf %21, %23 : vector<32x1xf32>
    %25 = arith.negf %24 : vector<32x1xf32>
    %26 = math.exp %25 : vector<32x1xf32>
    %cst_17 = arith.constant 1.000000e+00 : f32
    %27 = vector.broadcast %cst_17 : f32 to vector<32x1xf32>
    %28 = arith.addf %27, %26 : vector<32x1xf32>
    %29 = arith.divf %27, %28 : vector<32x1xf32>
    %c0_18 = arith.constant 0 : index
    %c0_19 = arith.constant 0 : index
    %30 = vector.load %arg8[%c0_18, %c0_19] : memref<32x1xf32, #tpu.memory_space<vmem>>, vector<32x1xf32>
    tpu.vector_store %arg8[%c0_18, %c0_19], %29 {strides = array<i32>} : memref<32x1xf32, #tpu.memory_space<vmem>>, vector<32x1xf32>,
    return
  }
  func.func @transform_0(%arg0: i32) -> (i32, i32) {
    %c0_i32 = arith.constant 0 : i32
    %c0_i32_0 = arith.constant 0 : i32
    return %arg0, %c0_i32 : i32, i32
  }
  func.func @transform_1(%arg0: i32) -> (i32, i32) {
    %c0_i32 = arith.constant 0 : i32
    %c0_i32_0 = arith.constant 0 : i32
    %c0_i32_1 = arith.constant 0 : i32
    return %c0_i32, %c0_i32_0 : i32, i32
  }
  func.func @transform_2(%arg0: i32) -> (i32, i32) {
    %c0_i32 = arith.constant 0 : i32
    %c0_i32_0 = arith.constant 0 : i32
    %c0_i32_1 = arith.constant 0 : i32
    return %c0_i32, %c0_i32_0 : i32, i32
  }
  func.func @transform_3(%arg0: i32) -> (i32, i32) {
    %c0_i32 = arith.constant 0 : i32
    %c0_i32_0 = arith.constant 0 : i32
    %c0_i32_1 = arith.constant 0 : i32
    return %c0_i32, %c0_i32_0 : i32, i32
  }
  func.func @transform_4(%arg0: i32) -> (i32, i32) {
    %c0_i32 = arith.constant 0 : i32
    %c0_i32_0 = arith.constant 0 : i32
    %c0_i32_1 = arith.constant 0 : i32
    return %c0_i32, %c0_i32_0 : i32, i32
  }
  func.func @transform_5(%arg0: i32) -> (i32, i32) {
    %c0_i32 = arith.constant 0 : i32
    %c0_i32_0 = arith.constant 0 : i32
    %c0_i32_1 = arith.constant 0 : i32
    return %c0_i32, %c0_i32_0 : i32, i32
  }
  func.func @transform_6(%arg0: i32) -> (i32, i32) {
    %c0_i32 = arith.constant 0 : i32
    %c0_i32_0 = arith.constant 0 : i32
    %c0_i32_1 = arith.constant 0 : i32
    return %c0_i32, %c0_i32_0 : i32, i32
  }
  func.func @transform_7(%arg0: i32) -> (i32, i32) {
    %c0_i32 = arith.constant 0 : i32
    %c0_i32_0 = arith.constant 0 : i32
    return %arg0, %c0_i32 : i32, i32
  }
}

</mosaic_0001>

<llo_original>
// kernel: tpu_custom_call.1
$region0: #{tpu_custom_call.1}
  #allocation0 [shape = 'u32[]', space=smem, size = 0x4, offset = 0x4, fixed_abs, tag = 'smem constant byte address 0x4 - core index']
  #allocation1 [shape = 'u32[144,128]{1,0:T(1,128)}', space=vmem, size = 0x12000, scoped, tag = 'internal scratch']
  #allocation2 [shape = 'f32[1,1]{1,0:T(1,128)S(1)}', space=vmem, size = 0x200, scoped, tag = 'scoped memory for tpu_custom_call.1']
  %s0 = inlined_call_operand.vmem [shape: f32[64,32], index: 0, kind: input, shape index: {}]
  %s1 = inlined_call_operand.vmem [shape: bf16[32,128], index: 1, kind: input, shape index: {}]
  %s2 = inlined_call_operand.vmem [shape: f32[1,128], index: 2, kind: input, shape index: {}]
  %s3 = inlined_call_operand.vmem [shape: bf16[128,128], index: 3, kind: input, shape index: {}]
  %s4 = inlined_call_operand.vmem [shape: f32[1,128], index: 4, kind: input, shape index: {}]
  %s5 = inlined_call_operand.vmem [shape: f32[1,128], index: 5, kind: input, shape index: {}]
  %s6 = inlined_call_operand.<no memory space> [shape: f32[1,1], index: 6, kind: input, shape index: {}]
  %s7 = inlined_call_operand.vmem [shape: f32[64,1], index: 7, kind: output, shape index: {}]
  %s8 = sld [smem:[#allocation0]]
  $region61: #{tpu_custom_call.1} parent=0
    _
  %s10 = ssub.s32 1, %s8
  %s11 = scalar_select 0, %s10, %s8
  %v12 = vstv %s6
  %13 = vst [vmem:[#allocation2] sm:$0x1] %v12
  loop: start=0, step=1, limit=4
  $region2: #{tpu_custom_call.1} parent=0 // loop_pre_header
    _
  $region3: #{tpu_custom_call.1} parent=0 // loop_header
    %s15 = sphi 0, %s19
    %p16 = scmp.ge.s32.totalorder %s15, 4
    %s25 = sphi 0, %s27
    %s28 = sphi 0, %s25
    %s29 = sphi 0, %s28
    %s45 = sphi 0, %s29
    %s49 = sphi 0, %s49
    %s51 = sphi 0, %s49
    %s52 = sphi 0, %s51
    %s66 = sphi 0, %s52
    %s70 = sphi 0, %s70
    %s72 = sphi 0, %s70
    %s73 = sphi 0, %s72
    %s87 = sphi 0, %s73
    %s91 = sphi 0, %s91
    %s93 = sphi 0, %s91
    %s94 = sphi 0, %s93
    %s108 = sphi 0, %s94
    %s112 = sphi 0, %s112
    %s114 = sphi 0, %s112
    %s115 = sphi 0, %s114
    %s129 = sphi 0, %s115
    %s133 = sphi 0, %s133
    %s135 = sphi 0, %s133
    %s136 = sphi 0, %s135
    %s150 = sphi 0, %s136
    %s154 = sphi 0, %s154
    %s156 = sphi 0, %s154
    %s157 = sphi 0, %s156
    %s171 = sphi 0, %s157
    %s177 = sphi 0, %s179
    %s180 = sphi 0, %s177
    %s181 = sphi 0, %s180
    %s197 = sphi 0, %s181
  $region4: #{tpu_custom_call.1} parent=0 // loop_header_branch
    %18 = sbr.rel (%p16) target = $region8
  $region5: #{tpu_custom_call.1} parent=0 // loop_body
    %s20 = ssub.s32 %s15, 1
    %s21 = ssub.s32 %s15, 2
    %s22 = sadd.s32 %s15, 1
    %s23 = ssub.s32 %s15, %s22
    %p24 = scmp.eq.s32.totalorder %s23, 0
    %s26 = sadd.s32 %s25, 1
    %s27 = scalar_select %p24, %s25, %s26
    %p30 = pneg %p24
    %p31 = scmp.eq.s32.totalorder %s15, 1
    %p32 = por %p30, %p31
    %p33 = scmp.ne.s32.totalorder %s25, %s28
    %p34 = scmp.eq.s32.totalorder %s15, 0
    %p35 = por %p33, %p34
    %p36 = scmp.ne.s32.totalorder %s25, %s28
    %p37 = scmp.eq.s32.totalorder %s20, 1
    %p38 = por %p36, %p37
    %p39 = scmp.ne.s32.totalorder %s28, %s29
    %p40 = scmp.eq.s32.totalorder %s20, 0
    %p41 = por %p39, %p40
    %p42 = scmp.ne.s32.totalorder %s28, %s29
    %p43 = scmp.eq.s32.totalorder %s21, 1
    %p44 = por %p42, %p43
    %p46 = scmp.ne.s32.totalorder %s29, %s45
    %p47 = scmp.eq.s32.totalorder %s21, 0
    %p48 = por %p46, %p47
    %s50 = sadd.s32 %s49, 1
    %p53 = scmp.eq.s32.totalorder %s15, 1
    %p54 = scmp.ne.s32.totalorder %s49, %s51
    %p55 = scmp.eq.s32.totalorder %s15, 0
    %p56 = por %p54, %p55
    %p57 = scmp.ne.s32.totalorder %s49, %s51
    %p58 = scmp.eq.s32.totalorder %s20, 1
    %p59 = por %p57, %p58
    %p60 = scmp.ne.s32.totalorder %s51, %s52
    %p61 = scmp.eq.s32.totalorder %s20, 0
    %p62 = por %p60, %p61
    %p63 = scmp.ne.s32.totalorder %s51, %s52
    %p64 = scmp.eq.s32.totalorder %s21, 1
    %p65 = por %p63, %p64
    %p67 = scmp.ne.s32.totalorder %s52, %s66
    %p68 = scmp.eq.s32.totalorder %s21, 0
    %p69 = por %p67, %p68
    %s71 = sadd.s32 %s70, 1
    %p74 = scmp.eq.s32.totalorder %s15, 1
    %p75 = scmp.ne.s32.totalorder %s70, %s72
    %p76 = scmp.eq.s32.totalorder %s15, 0
    %p77 = por %p75, %p76
    %p78 = scmp.ne.s32.totalorder %s70, %s72
    %p79 = scmp.eq.s32.totalorder %s20, 1
    %p80 = por %p78, %p79
    %p81 = scmp.ne.s32.totalorder %s72, %s73
    %p82 = scmp.eq.s32.totalorder %s20, 0
    %p83 = por %p81, %p82
    %p84 = scmp.ne.s32.totalorder %s72, %s73
    %p85 = scmp.eq.s32.totalorder %s21, 1
    %p86 = por %p84, %p85
    %p88 = scmp.ne.s32.totalorder %s73, %s87
    %p89 = scmp.eq.s32.totalorder %s21, 0
    %p90 = por %p88, %p89
    %s92 = sadd.s32 %s91, 1
    %p95 = scmp.eq.s32.totalorder %s15, 1
    %p96 = scmp.ne.s32.totalorder %s91, %s93
    %p97 = scmp.eq.s32.totalorder %s15, 0
    %p98 = por %p96, %p97
    %p99 = scmp.ne.s32.totalorder %s91, %s93
    %p100 = scmp.eq.s32.totalorder %s20, 1
    %p101 = por %p99, %p100
    %p102 = scmp.ne.s32.totalorder %s93, %s94
    %p103 = scmp.eq.s32.totalorder %s20, 0
    %p104 = por %p102, %p103
    %p105 = scmp.ne.s32.totalorder %s93, %s94
    %p106 = scmp.eq.s32.totalorder %s21, 1
    %p107 = por %p105, %p106
    %p109 = scmp.ne.s32.totalorder %s94, %s108
    %p110 = scmp.eq.s32.totalorder %s21, 0
    %p111 = por %p109, %p110
    %s113 = sadd.s32 %s112, 1
    %p116 = scmp.eq.s32.totalorder %s15, 1
    %p117 = scmp.ne.s32.totalorder %s112, %s114
    %p118 = scmp.eq.s32.totalorder %s15, 0
    %p119 = por %p117, %p118
    %p120 = scmp.ne.s32.totalorder %s112, %s114
    %p121 = scmp.eq.s32.totalorder %s20, 1
    %p122 = por %p120, %p121
    %p123 = scmp.ne.s32.totalorder %s114, %s115
    %p124 = scmp.eq.s32.totalorder %s20, 0
    %p125 = por %p123, %p124
    %p126 = scmp.ne.s32.totalorder %s114, %s115
    %p127 = scmp.eq.s32.totalorder %s21, 1
    %p128 = por %p126, %p127
    %p130 = scmp.ne.s32.totalorder %s115, %s129
    %p131 = scmp.eq.s32.totalorder %s21, 0
    %p132 = por %p130, %p131
    %s134 = sadd.s32 %s133, 1
    %p137 = scmp.eq.s32.totalorder %s15, 1
    %p138 = scmp.ne.s32.totalorder %s133, %s135
    %p139 = scmp.eq.s32.totalorder %s15, 0
    %p140 = por %p138, %p139
    %p141 = scmp.ne.s32.totalorder %s133, %s135
    %p142 = scmp.eq.s32.totalorder %s20, 1
    %p143 = por %p141, %p142
    %p144 = scmp.ne.s32.totalorder %s135, %s136
    %p145 = scmp.eq.s32.totalorder %s20, 0
    %p146 = por %p144, %p145
    %p147 = scmp.ne.s32.totalorder %s135, %s136
    %p148 = scmp.eq.s32.totalorder %s21, 1
    %p149 = por %p147, %p148
    %p151 = scmp.ne.s32.totalorder %s136, %s150
    %p152 = scmp.eq.s32.totalorder %s21, 0
    %p153 = por %p151, %p152
    %s155 = sadd.s32 %s154, 1
    %p158 = scmp.eq.s32.totalorder %s15, 1
    %p159 = scmp.ne.s32.totalorder %s154, %s156
    %p160 = scmp.eq.s32.totalorder %s15, 0
    %p161 = por %p159, %p160
    %p162 = scmp.ne.s32.totalorder %s154, %s156
    %p163 = scmp.eq.s32.totalorder %s20, 1
    %p164 = por %p162, %p163
    %p165 = scmp.ne.s32.totalorder %s156, %s157
    %p166 = scmp.eq.s32.totalorder %s20, 0
    %p167 = por %p165, %p166
    %p168 = scmp.ne.s32.totalorder %s156, %s157
    %p169 = scmp.eq.s32.totalorder %s21, 1
    %p170 = por %p168, %p169
    %p172 = scmp.ne.s32.totalorder %s157, %s171
    %p173 = scmp.eq.s32.totalorder %s21, 0
    %p174 = por %p172, %p173
    %s175 = ssub.s32 %s15, %s22
    %p176 = scmp.eq.s32.totalorder %s175, 0
    %s178 = sadd.s32 %s177, 1
    %s179 = scalar_select %p176, %s177, %s178
    %p182 = pneg %p176
    %p183 = scmp.eq.s32.totalorder %s15, 1
    %p184 = por %p182, %p183
    %p185 = scmp.ne.s32.totalorder %s177, %s180
    %p186 = scmp.eq.s32.totalorder %s15, 0
    %p187 = por %p185, %p186
    %p188 = scmp.ne.s32.totalorder %s177, %s180
    %p189 = scmp.eq.s32.totalorder %s20, 1
    %p190 = por %p188, %p189
    %p191 = scmp.ne.s32.totalorder %s180, %s181
    %p192 = scmp.eq.s32.totalorder %s20, 0
    %p193 = por %p191, %p192
    %p194 = scmp.ne.s32.totalorder %s180, %s181
    %p195 = scmp.eq.s32.totalorder %s21, 1
    %p196 = por %p194, %p195
    %p198 = scmp.ne.s32.totalorder %s181, %s197
    %p199 = scmp.eq.s32.totalorder %s21, 0
    %p200 = por %p198, %p199
    %p201 = scmp.le.s32.totalorder 1, %s15
    %p202 = scmp.lt.s32.totalorder %s15, 3
    %p203 = pnand %p201, %p202
    %p204 = pneg %p203
    // Predicated region
    $region9: #{tpu_custom_call.1} parent=5 // pred_check
      _
    $region10: #{tpu_custom_call.1} parent=5 // pred_check_branch
      %206 = sbr.rel (%p203) target = $region12
    $region11: #{tpu_custom_call.1} parent=5 // pred_region
      %s207 = ssub.s32 %s15, 1
      // Predicated region
      $region13: #{tpu_custom_call.1} parent=11 // pred_check
        %p208 = pneg %p62
      $region14: #{tpu_custom_call.1} parent=11 // pred_check_branch
        %210 = sbr.rel (%p208) target = $region16
      $region15: #{tpu_custom_call.1} parent=11 // pred_region
        _
      $region16: #{tpu_custom_call.1} parent=11 // pred_fallthru
        _
      // Predicated region
      $region17: #{tpu_custom_call.1} parent=11 // pred_check
        %p211 = pneg %p83
      $region18: #{tpu_custom_call.1} parent=11 // pred_check_branch
        %213 = sbr.rel (%p211) target = $region20
      $region19: #{tpu_custom_call.1} parent=11 // pred_region
        _
      $region20: #{tpu_custom_call.1} parent=11 // pred_fallthru
        _
      // Predicated region
      $region21: #{tpu_custom_call.1} parent=11 // pred_check
        %p214 = pneg %p104
      $region22: #{tpu_custom_call.1} parent=11 // pred_check_branch
        %216 = sbr.rel (%p214) target = $region24
      $region23: #{tpu_custom_call.1} parent=11 // pred_region
        _
      $region24: #{tpu_custom_call.1} parent=11 // pred_fallthru
        _
      // Predicated region
      $region25: #{tpu_custom_call.1} parent=11 // pred_check
        %p217 = pneg %p125
      $region26: #{tpu_custom_call.1} parent=11 // pred_check_branch
        %219 = sbr.rel (%p217) target = $region28
      $region27: #{tpu_custom_call.1} parent=11 // pred_region
        _
      $region28: #{tpu_custom_call.1} parent=11 // pred_fallthru
        _
      // Predicated region
      $region29: #{tpu_custom_call.1} parent=11 // pred_check
        %p220 = pneg %p146
      $region30: #{tpu_custom_call.1} parent=11 // pred_check_branch
        %222 = sbr.rel (%p220) target = $region32
      $region31: #{tpu_custom_call.1} parent=11 // pred_region
        _
      $region32: #{tpu_custom_call.1} parent=11 // pred_fallthru
        _
      // Predicated region
      $region33: #{tpu_custom_call.1} parent=11 // pred_check
        %p223 = pneg %p167
      $region34: #{tpu_custom_call.1} parent=11 // pred_check_branch
        %225 = sbr.rel (%p223) target = $region36
      $region35: #{tpu_custom_call.1} parent=11 // pred_region
        _
      $region36: #{tpu_custom_call.1} parent=11 // pred_fallthru
        _
    $region12: #{tpu_custom_call.1} parent=5 // pred_fallthru
      _
    %p226 = scmp.lt.s32.totalorder %s15, 2
    // Predicated region
    $region37: #{tpu_custom_call.1} parent=5 // pred_check
      %p227 = pneg %p226
    $region38: #{tpu_custom_call.1} parent=5 // pred_check_branch
      %229 = sbr.rel (%p227) target = $region40
    $region39: #{tpu_custom_call.1} parent=5 // pred_region
      // Predicated region
      $region41: #{tpu_custom_call.1} parent=39 // pred_check
        %p230 = pneg %p35
      $region42: #{tpu_custom_call.1} parent=39 // pred_check_branch
        %232 = sbr.rel (%p230) target = $region44
      $region43: #{tpu_custom_call.1} parent=39 // pred_region
        %s233 = smul.u32 4, %s15
        %p234 = scmp.lt.s32.totalorder %s233, 7
        %s235 = scalar_select %p234, %s233, 7
        %s236 = smul.addr %s235, 8
        %s237 = scalar_lea.vmem %s0, %s236
        %s238 = smul.u32 4, %s15
      $region44: #{tpu_custom_call.1} parent=39 // pred_fallthru
        _
    $region40: #{tpu_custom_call.1} parent=5 // pred_fallthru
      _
    %p239 = scmp.le.s32.totalorder 1, %s15
    %p240 = scmp.lt.s32.totalorder %s15, 3
    %p241 = pnand %p239, %p240
    %p242 = pneg %p241
    // Predicated region
    $region45: #{tpu_custom_call.1} parent=5 // pred_check
      _
    $region46: #{tpu_custom_call.1} parent=5 // pred_check_branch
      %244 = sbr.rel (%p241) target = $region48
    $region47: #{tpu_custom_call.1} parent=5 // pred_region
      %s245 = ssub.s32 %s15, 1
      %s246 = smul.u32 4, %s20
      %p247 = scmp.lt.s32.totalorder %s246, 7
      %s248 = scalar_select %p247, %s246, 7
      %s249 = smul.addr %s248, 8
      %s250 = scalar_lea.vmem %s0, %s249
      %p251 = pneg %p41
      %p252 = pneg %p38
      %p253 = pneg %p62
      %p254 = pneg %p59
      %p255 = pneg %p83
      %p256 = pneg %p80
      %p257 = pneg %p104
      %p258 = pneg %p101
      %p259 = pneg %p125
      %p260 = pneg %p122
      %p261 = pneg %p146
      %p262 = pneg %p143
      %p263 = pneg %p167
      %p264 = pneg %p164
      %p265 = pneg %p193
      %p266 = pneg %p190
      %s267 = smul.u32 4, %s20
      %p268 = scmp.lt.s32.totalorder %s267, 7
      %s269 = scalar_select %p268, %s267, 7
      %s270 = smul.addr %s269, 8
      %s271 = scalar_lea.vmem %s7, %s270
      %s272 = smul.u32 4, %s20
      %p273 = scmp.lt.s32.totalorder %s272, 7
      %s274 = scalar_select %p273, %s272, 7
      %s275 = smul.addr %s274, 8
      %s276 = scalar_lea.vmem %s0, %s275
      %s277 = smul.u32 4, %s20
      %s278 = smul.u32 4, %s20
      %p279 = scmp.lt.s32.totalorder %s278, 7
      %s280 = scalar_select %p279, %s278, 7
      %s281 = smul.addr %s280, 8
      %s282 = scalar_lea.vmem %s7, %s281
      %s283 = smul.u32 4, %s20
      %v285 = vld [vmem:[%s276] sm:$0xff]
      %v286 = vld [vmem:[%s276 + $0x8] sm:$0xff]
      %v287 = vld [vmem:[%s276 + $0x10] sm:$0xff]
      %v288 = vld [vmem:[%s276 + $0x18] sm:$0xff]
      %v289 = vpack.c.bf16 %v286, %v285
      %v290 = vpack.c.bf16 %v288, %v287
      %v291 = vld [vmem:[%s1] sm:$0xf]
      %v292 = vld [vmem:[%s1 + $0x4] sm:$0xf]
      %v293 = vld [vmem:[%s1 + $0x8] sm:$0xf]
      %v294 = vld [vmem:[%s1 + $0xc] sm:$0xf]
      %v295 = vld [vmem:[%s2] sm:$0x1]
      %v297 = vlaneseq
      %v298 = vshrl.u32 %v297, 7
      %v299 = vsub.s32 0, %v298
      %v300 = vrot.slane %v295, %v299
      %v306 = vunpack.c.l.b16 %v291
      %v307 = vunpack.c.l.b16 %v292
      %v308 = vunpack.c.l.b16 %v293
      %v309 = vunpack.c.l.b16 %v294
      %v310 = vpack.c.b16 %v307, %v306
      %v311 = vpack.c.b16 %v309, %v308
      %vm314 = vcmask 261120
      %v316 = vsel %vm314, %v289, 0
      %v319 = vsel %vm314, %v290, 0
      %321 = vmatprep.subr.bf16.mxu0 0
      %322 = vmatpush1.bf16.msra.mxu0 0
      %323 = vmatprep.subr.bf16.mxu0 0
      %324 = vmatpush1.bf16.msra.mxu0 0
      %325 = vmatprep.subr.bf16.mxu0 0
      %326 = vmatpush1.bf16.msra.mxu0 0
      %327 = vmatprep.subr.bf16.mxu0 0
      %328 = vmatpush1.bf16.msra.mxu0 0
      %329 = vmatprep.subr.bf16.mxu0 0
      %330 = vmatpush1.bf16.msra.mxu0 0
      %331 = vmatprep.subr.bf16.mxu0 0
      %332 = vmatpush1.bf16.msra.mxu0 0
      %333 = vmatprep.subr.bf16.mxu0 0
      %334 = vmatpush1.bf16.msra.mxu0 %v311
      %335 = vmatprep.subr.bf16.mxu0 0
      %336 = vmatpush1.bf16.msra.mxu0 %v310
      %337 = vmatprep.subr.bf16.mxu0 0
      %338 = vmatpush2.bf16.msra.mxu0 0
      %339 = vmatprep.subr.bf16.mxu0 0
      %340 = vmatpush2.bf16.msra.mxu0 0
      %341 = vmatprep.subr.bf16.mxu0 0
      %342 = vmatpush2.bf16.msra.mxu0 0
      %343 = vmatprep.subr.bf16.mxu0 0
      %344 = vmatpush2.bf16.msra.mxu0 0
      %345 = vmatprep.subr.bf16.mxu0 0
      %346 = vmatpush2.bf16.msra.mxu0 0
      %347 = vmatprep.subr.bf16.mxu0 0
      %348 = vmatpush2.bf16.msra.mxu0 0
      %349 = vmatprep.subr.bf16.mxu0 0
      %350 = vmatpush2.bf16.msra.mxu0 0
      %351 = vmatprep.subr.bf16.mxu0 0
      %352 = vmatpush2.bf16.msra.mxu0 0
      %353 = vmatprep.mubr.bf16.mxu0 0
      %354 = vmatmul.mubr.bf16.gmra.mxu0 %v316
      %v355 = vpop.f32.mrf.mxu0
      %v356 = vadd.f32 %v300, %v355
      %v357 = vpop.f32.mrf.mxu0
      %v358 = vpop.f32.mrf.mxu0
      %v359 = vadd.f32 %v300, %v358
      %v360 = vpop.f32.mrf.mxu0
      %361 = vmatprep.mubr.bf16.mxu0 0
      %362 = vmatmul.mubr.bf16.gmra.mxu0 %v319
      %v363 = vpop.f32.mrf.mxu0
      %v364 = vadd.f32 %v300, %v363
      %v365 = vpop.f32.mrf.mxu0
      %v366 = vpop.f32.mrf.mxu0
      %v367 = vadd.f32 %v300, %v366
      %v368 = vpop.f32.mrf.mxu0
      %369 = vdwg.mxu0
      %v370 = vmax.f32 %v356, 0.0
      %v371 = vmax.f32 %v359, 0.0
      %v372 = vmax.f32 %v364, 0.0
      %v373 = vmax.f32 %v367, 0.0
      %v374 = vpack.c.bf16 %v371, %v370
      %v375 = vpack.c.bf16 %v373, %v372
      %v376 = vld [vmem:[%s3] sm:$0xf]
      %v377 = vld [vmem:[%s3 + $0x4] sm:$0xf]
      %v378 = vld [vmem:[%s3 + $0x8] sm:$0xf]
      %v379 = vld [vmem:[%s3 + $0xc] sm:$0xf]
      %v380 = vld [vmem:[%s3 + $0x10] sm:$0xf]
      %v381 = vld [vmem:[%s3 + $0x14] sm:$0xf]
      %v382 = vld [vmem:[%s3 + $0x18] sm:$0xf]
      %v383 = vld [vmem:[%s3 + $0x1c] sm:$0xf]
      %v384 = vld [vmem:[%s3 + $0x20] sm:$0xf]
      %v385 = vld [vmem:[%s3 + $0x24] sm:$0xf]
      %v386 = vld [vmem:[%s3 + $0x28] sm:$0xf]
      %v387 = vld [vmem:[%s3 + $0x2c] sm:$0xf]
      %v388 = vld [vmem:[%s3 + $0x30] sm:$0xf]
      %v389 = vld [vmem:[%s3 + $0x34] sm:$0xf]
      %v390 = vld [vmem:[%s3 + $0x38] sm:$0xf]
      %v391 = vld [vmem:[%s3 + $0x3c] sm:$0xf]
      %v392 = vld [vmem:[%s4] sm:$0x1]
      %v394 = vlaneseq
      %v395 = vshrl.u32 %v394, 7
      %v396 = vsub.s32 0, %v395
      %v397 = vrot.slane %v392, %v396
      %v415 = vunpack.c.l.b16 %v376
      %v416 = vunpack.c.l.b16 %v377
      %v417 = vunpack.c.l.b16 %v378
      %v418 = vunpack.c.l.b16 %v379
      %v419 = vunpack.c.l.b16 %v380
      %v420 = vunpack.c.l.b16 %v381
      %v421 = vunpack.c.l.b16 %v382
      %v422 = vunpack.c.l.b16 %v383
      %v423 = vunpack.c.l.b16 %v384
      %v424 = vunpack.c.l.b16 %v385
      %v425 = vunpack.c.l.b16 %v386
      %v426 = vunpack.c.l.b16 %v387
      %v427 = vunpack.c.l.b16 %v388
      %v428 = vunpack.c.l.b16 %v389
      %v429 = vunpack.c.l.b16 %v390
      %v430 = vunpack.c.l.b16 %v391
      %v431 = vpack.c.b16 %v416, %v415
      %v432 = vpack.c.b16 %v418, %v417
      %v433 = vpack.c.b16 %v420, %v419
      %v434 = vpack.c.b16 %v422, %v421
      %v435 = vpack.c.b16 %v424, %v423
      %v436 = vpack.c.b16 %v426, %v425
      %v437 = vpack.c.b16 %v428, %v427
      %v438 = vpack.c.b16 %v430, %v429
      %447 = vmatprep.subr.bf16.mxu0 0
      %448 = vmatpush1.bf16.msra.mxu0 %v438
      %449 = vmatprep.subr.bf16.mxu0 0
      %450 = vmatpush1.bf16.msra.mxu0 %v437
      %451 = vmatprep.subr.bf16.mxu0 0
      %452 = vmatpush1.bf16.msra.mxu0 %v436
      %453 = vmatprep.subr.bf16.mxu0 0
      %454 = vmatpush1.bf16.msra.mxu0 %v435
      %455 = vmatprep.subr.bf16.mxu0 0
      %456 = vmatpush1.bf16.msra.mxu0 %v434
      %457 = vmatprep.subr.bf16.mxu0 0
      %458 = vmatpush1.bf16.msra.mxu0 %v433
      %459 = vmatprep.subr.bf16.mxu0 0
      %460 = vmatpush1.bf16.msra.mxu0 %v432
      %461 = vmatprep.subr.bf16.mxu0 0
      %462 = vmatpush1.bf16.msra.mxu0 %v431
      %463 = vmatprep.subr.bf16.mxu0 0
      %464 = vmatpush2.bf16.msra.mxu0 0
      %465 = vmatprep.subr.bf16.mxu0 0
      %466 = vmatpush2.bf16.msra.mxu0 0
      %467 = vmatprep.subr.bf16.mxu0 0
      %468 = vmatpush2.bf16.msra.mxu0 0
      %469 = vmatprep.subr.bf16.mxu0 0
      %470 = vmatpush2.bf16.msra.mxu0 0
      %471 = vmatprep.subr.bf16.mxu0 0
      %472 = vmatpush2.bf16.msra.mxu0 0
      %473 = vmatprep.subr.bf16.mxu0 0
      %474 = vmatpush2.bf16.msra.mxu0 0
      %475 = vmatprep.subr.bf16.mxu0 0
      %476 = vmatpush2.bf16.msra.mxu0 0
      %477 = vmatprep.subr.bf16.mxu0 0
      %478 = vmatpush2.bf16.msra.mxu0 0
      %479 = vmatprep.mubr.bf16.mxu0 0
      %480 = vmatmul.mubr.bf16.gmra.mxu0 %v374
      %v481 = vpop.f32.mrf.mxu0
      %v482 = vadd.f32 %v397, %v481
      %v483 = vpop.f32.mrf.mxu0
      %v484 = vpop.f32.mrf.mxu0
      %v485 = vadd.f32 %v397, %v484
      %v486 = vpop.f32.mrf.mxu0
      %487 = vmatprep.mubr.bf16.mxu0 0
      %488 = vmatmul.mubr.bf16.gmra.mxu0 %v375
      %v489 = vpop.f32.mrf.mxu0
      %v490 = vadd.f32 %v397, %v489
      %v491 = vpop.f32.mrf.mxu0
      %v492 = vpop.f32.mrf.mxu0
      %v493 = vadd.f32 %v397, %v492
      %v494 = vpop.f32.mrf.mxu0
      %495 = vdwg.mxu0
      %v496 = vmax.f32 %v482, 0.0
      %v497 = vmax.f32 %v485, 0.0
      %v498 = vmax.f32 %v490, 0.0
      %v499 = vmax.f32 %v493, 0.0
      %v500 = vld [vmem:[%s5] sm:$0x1]
      %v502 = vlaneseq
      %v503 = vshrl.u32 %v502, 7
      %v504 = vsub.s32 0, %v503
      %v505 = vrot.slane %v500, %v504
      %v507 = vmul.f32 %v496, %v505
      %v508 = vmul.f32 %v497, %v505
      %v509 = vmul.f32 %v498, %v505
      %v510 = vmul.f32 %v499, %v505
      %511 = vadd.xlane.f32.xlu0 %v507
      %v512 = vpop.xlane.xlu0 %511
      %513 = vadd.xlane.f32.xlu0 %v508
      %v514 = vpop.xlane.xlu0 %513
      %515 = vadd.xlane.f32.xlu0 %v509
      %v516 = vpop.xlane.xlu0 %515
      %517 = vadd.xlane.f32.xlu0 %v510
      %v518 = vpop.xlane.xlu0 %517
      %v519 = vld [vmem:[#allocation2] sm:$0x1]
      %v521 = vlaneseq
      %v522 = vshrl.u32 %v521, 7
      %v523 = vsub.s32 0, %v522
      %v524 = vrot.slane %v519, %v523
      %v526 = vadd.f32 %v512, %v524
      %v527 = vadd.f32 %v514, %v524
      %v528 = vadd.f32 %v516, %v524
      %v529 = vadd.f32 %v518, %v524
      %v530 = vxor.u32 %v526, 2147483648
      %v531 = vxor.u32 %v527, 2147483648
      %v532 = vxor.u32 %v528, 2147483648
      %v533 = vxor.u32 %v529, 2147483648
      %v534 = vmul.f32 %v530, 1.442695
      %v535 = vpow.pop %v534
      %v536 = vmul.f32 %v531, 1.442695
      %v537 = vpow.pop %v536
      %v538 = vmul.f32 %v532, 1.442695
      %v539 = vpow.pop %v538
      %v540 = vmul.f32 %v533, 1.442695
      %v541 = vpow.pop %v540
      %v542 = vadd.f32 %v535, 1.0
      %v543 = vadd.f32 %v537, 1.0
      %v544 = vadd.f32 %v539, 1.0
      %v545 = vadd.f32 %v541, 1.0
      %v546 = vrcp.pop %v542
      %v547 = vmul.f32 1.0, %v546
      %v548 = vrcp.pop %v543
      %v549 = vmul.f32 1.0, %v548
      %v550 = vrcp.pop %v544
      %v551 = vmul.f32 1.0, %v550
      %v552 = vrcp.pop %v545
      %v553 = vmul.f32 1.0, %v552
      %vm554 = vcmask 7168
      %555 = vst.msk [vmem:[%s282] sm:$0xff] %vm554, %v547
      %556 = vst.msk [vmem:[%s282 + $0x8] sm:$0xff] %vm554, %v549
      %557 = vst.msk [vmem:[%s282 + $0x10] sm:$0xff] %vm554, %v551
      %558 = vst.msk [vmem:[%s282 + $0x18] sm:$0xff] %vm554, %v553
      %s559 = smul.u32 4, %s20
      %p560 = scmp.lt.s32.totalorder %s559, 7
      %s561 = scalar_select %p560, %s559, 7
      %s562 = smul.addr %s561, 8
      %s563 = scalar_lea.vmem %s7, %s562
      // Predicated region
      $region49: #{tpu_custom_call.1} parent=47 // pred_check
        %p564 = pneg %p190
      $region50: #{tpu_custom_call.1} parent=47 // pred_check_branch
        %566 = sbr.rel (%p564) target = $region52
      $region51: #{tpu_custom_call.1} parent=47 // pred_region
        %s567 = smul.u32 4, %s20
      $region52: #{tpu_custom_call.1} parent=47 // pred_fallthru
        _
    $region48: #{tpu_custom_call.1} parent=5 // pred_fallthru
      _
    %p568 = scmp.le.s32.totalorder 2, %s15
    // Predicated region
    $region53: #{tpu_custom_call.1} parent=5 // pred_check
      %p569 = pneg %p568
    $region54: #{tpu_custom_call.1} parent=5 // pred_check_branch
      %571 = sbr.rel (%p569) target = $region56
    $region55: #{tpu_custom_call.1} parent=5 // pred_region
      %s572 = ssub.s32 %s15, 2
      // Predicated region
      $region57: #{tpu_custom_call.1} parent=55 // pred_check
        %p573 = pneg %p196
      $region58: #{tpu_custom_call.1} parent=55 // pred_check_branch
        %575 = sbr.rel (%p573) target = $region60
      $region59: #{tpu_custom_call.1} parent=55 // pred_region
        %s576 = smul.u32 4, %s21
        %p577 = scmp.lt.s32.totalorder %s576, 7
        %s578 = scalar_select %p577, %s576, 7
        %s579 = smul.addr %s578, 8
        %s580 = scalar_lea.vmem %s7, %s579
      $region60: #{tpu_custom_call.1} parent=55 // pred_fallthru
        _
    $region56: #{tpu_custom_call.1} parent=5 // pred_fallthru
      _
  $region6: #{tpu_custom_call.1} parent=0 // loop_footer
    %s19 = sadd.s32 1, %s15
  $region7: #{tpu_custom_call.1} parent=0 // loop_footer_branch
    %14 = sbr.rel target = $region3
  $region8: #{tpu_custom_call.1} parent=0 // loop_exit
    _

// kernel: tpu_custom_call.1
$region0: #{tpu_custom_call.1}
  #allocation0 [shape = 'u32[]', space=smem, size = 0x4, offset = 0x4, fixed_abs, tag = 'smem constant byte address 0x4 - core index']
  #allocation1 [shape = 'u32[144,128]{1,0:T(1,128)}', space=vmem, size = 0x12000, scoped, tag = 'internal scratch']
  #allocation2 [shape = 'f32[1,1]{1,0:T(1,128)S(1)}', space=vmem, size = 0x200, scoped, tag = 'scoped memory for tpu_custom_call.1']
  %s0 = inlined_call_operand.vmem [shape: f32[64,32], index: 0, kind: input, shape index: {}]
  %s1 = inlined_call_operand.vmem [shape: bf16[32,128], index: 1, kind: input, shape index: {}]
  %s2 = inlined_call_operand.vmem [shape: f32[1,128], index: 2, kind: input, shape index: {}]
  %s3 = inlined_call_operand.vmem [shape: bf16[128,128], index: 3, kind: input, shape index: {}]
  %s4 = inlined_call_operand.vmem [shape: f32[1,128], index: 4, kind: input, shape index: {}]
  %s5 = inlined_call_operand.vmem [shape: f32[1,128], index: 5, kind: input, shape index: {}]
  %s6 = inlined_call_operand.<no memory space> [shape: f32[1,1], index: 6, kind: input, shape index: {}]
  %s7 = inlined_call_operand.vmem [shape: f32[64,1], index: 7, kind: output, shape index: {}]
  %s8 = sld [smem:[#allocation0]]
  $region61: #{tpu_custom_call.1} parent=0
    _
  %s10 = ssub.s32 1, %s8
  %s11 = scalar_select 0, %s10, %s8
  %v12 = vstv %s6
  %13 = vst [vmem:[#allocation2] sm:$0x1] %v12
  loop: start=0, step=1, limit=4
  $region2: #{tpu_custom_call.1} parent=0 // loop_pre_header
    _
  $region3: #{tpu_custom_call.1} parent=0 // loop_header
    %s15 = sphi 0, %s19
    %p16 = scmp.ge.s32.totalorder %s15, 4
    %s25 = sphi 0, %s27
    %s28 = sphi 0, %s25
    %s29 = sphi 0, %s28
    %s45 = sphi 0, %s29
    %s49 = sphi 0, %s49
    %s51 = sphi 0, %s49
    %s52 = sphi 0, %s51
    %s66 = sphi 0, %s52
    %s70 = sphi 0, %s70
    %s72 = sphi 0, %s70
    %s73 = sphi 0, %s72
    %s87 = sphi 0, %s73
    %s91 = sphi 0, %s91
    %s93 = sphi 0, %s91
    %s94 = sphi 0, %s93
    %s108 = sphi 0, %s94
    %s112 = sphi 0, %s112
    %s114 = sphi 0, %s112
    %s115 = sphi 0, %s114
    %s129 = sphi 0, %s115
    %s133 = sphi 0, %s133
    %s135 = sphi 0, %s133
    %s136 = sphi 0, %s135
    %s150 = sphi 0, %s136
    %s154 = sphi 0, %s154
    %s156 = sphi 0, %s154
    %s157 = sphi 0, %s156
    %s171 = sphi 0, %s157
    %s177 = sphi 0, %s179
    %s180 = sphi 0, %s177
    %s181 = sphi 0, %s180
    %s197 = sphi 0, %s181
  $region4: #{tpu_custom_call.1} parent=0 // loop_header_branch
    %18 = sbr.rel (%p16) target = $region8
  $region5: #{tpu_custom_call.1} parent=0 // loop_body
    %s20 = ssub.s32 %s15, 1
    %s21 = ssub.s32 %s15, 2
    %s22 = sadd.s32 %s15, 1
    %s23 = ssub.s32 %s15, %s22
    %p24 = scmp.eq.s32.totalorder %s23, 0
    %s26 = sadd.s32 %s25, 1
    %s27 = scalar_select %p24, %s25, %s26
    %p30 = pneg %p24
    %p31 = scmp.eq.s32.totalorder %s15, 1
    %p32 = por %p30, %p31
    %p33 = scmp.ne.s32.totalorder %s25, %s28
    %p34 = scmp.eq.s32.totalorder %s15, 0
    %p35 = por %p33, %p34
    %p36 = scmp.ne.s32.totalorder %s25, %s28
    %p37 = scmp.eq.s32.totalorder %s20, 1
    %p38 = por %p36, %p37
    %p39 = scmp.ne.s32.totalorder %s28, %s29
    %p40 = scmp.eq.s32.totalorder %s20, 0
    %p41 = por %p39, %p40
    %p42 = scmp.ne.s32.totalorder %s28, %s29
    %p43 = scmp.eq.s32.totalorder %s21, 1
    %p44 = por %p42, %p43
    %p46 = scmp.ne.s32.totalorder %s29, %s45
    %p47 = scmp.eq.s32.totalorder %s21, 0
    %p48 = por %p46, %p47
    %s50 = sadd.s32 %s49, 1
    %p53 = scmp.eq.s32.totalorder %s15, 1
    %p54 = scmp.ne.s32.totalorder %s49, %s51
    %p55 = scmp.eq.s32.totalorder %s15, 0
    %p56 = por %p54, %p55
    %p57 = scmp.ne.s32.totalorder %s49, %s51
    %p58 = scmp.eq.s32.totalorder %s20, 1
    %p59 = por %p57, %p58
    %p60 = scmp.ne.s32.totalorder %s51, %s52
    %p61 = scmp.eq.s32.totalorder %s20, 0
    %p62 = por %p60, %p61
    %p63 = scmp.ne.s32.totalorder %s51, %s52
    %p64 = scmp.eq.s32.totalorder %s21, 1
    %p65 = por %p63, %p64
    %p67 = scmp.ne.s32.totalorder %s52, %s66
    %p68 = scmp.eq.s32.totalorder %s21, 0
    %p69 = por %p67, %p68
    %s71 = sadd.s32 %s70, 1
    %p74 = scmp.eq.s32.totalorder %s15, 1
    %p75 = scmp.ne.s32.totalorder %s70, %s72
    %p76 = scmp.eq.s32.totalorder %s15, 0
    %p77 = por %p75, %p76
    %p78 = scmp.ne.s32.totalorder %s70, %s72
    %p79 = scmp.eq.s32.totalorder %s20, 1
    %p80 = por %p78, %p79
    %p81 = scmp.ne.s32.totalorder %s72, %s73
    %p82 = scmp.eq.s32.totalorder %s20, 0
    %p83 = por %p81, %p82
    %p84 = scmp.ne.s32.totalorder %s72, %s73
    %p85 = scmp.eq.s32.totalorder %s21, 1
    %p86 = por %p84, %p85
    %p88 = scmp.ne.s32.totalorder %s73, %s87
    %p89 = scmp.eq.s32.totalorder %s21, 0
    %p90 = por %p88, %p89
    %s92 = sadd.s32 %s91, 1
    %p95 = scmp.eq.s32.totalorder %s15, 1
    %p96 = scmp.ne.s32.totalorder %s91, %s93
    %p97 = scmp.eq.s32.totalorder %s15, 0
    %p98 = por %p96, %p97
    %p99 = scmp.ne.s32.totalorder %s91, %s93
    %p100 = scmp.eq.s32.totalorder %s20, 1
    %p101 = por %p99, %p100
    %p102 = scmp.ne.s32.totalorder %s93, %s94
    %p103 = scmp.eq.s32.totalorder %s20, 0
    %p104 = por %p102, %p103
    %p105 = scmp.ne.s32.totalorder %s93, %s94
    %p106 = scmp.eq.s32.totalorder %s21, 1
    %p107 = por %p105, %p106
    %p109 = scmp.ne.s32.totalorder %s94, %s108
    %p110 = scmp.eq.s32.totalorder %s21, 0
    %p111 = por %p109, %p110
    %s113 = sadd.s32 %s112, 1
    %p116 = scmp.eq.s32.totalorder %s15, 1
    %p117 = scmp.ne.s32.totalorder %s112, %s114
    %p118 = scmp.eq.s32.totalorder %s15, 0
    %p119 = por %p117, %p118
    %p120 = scmp.ne.s32.totalorder %s112, %s114
    %p121 = scmp.eq.s32.totalorder %s20, 1
    %p122 = por %p120, %p121
    %p123 = scmp.ne.s32.totalorder %s114, %s115
    %p124 = scmp.eq.s32.totalorder %s20, 0
    %p125 = por %p123, %p124
    %p126 = scmp.ne.s32.totalorder %s114, %s115
    %p127 = scmp.eq.s32.totalorder %s21, 1
    %p128 = por %p126, %p127
    %p130 = scmp.ne.s32.totalorder %s115, %s129
    %p131 = scmp.eq.s32.totalorder %s21, 0
    %p132 = por %p130, %p131
    %s134 = sadd.s32 %s133, 1
    %p137 = scmp.eq.s32.totalorder %s15, 1
    %p138 = scmp.ne.s32.totalorder %s133, %s135
    %p139 = scmp.eq.s32.totalorder %s15, 0
    %p140 = por %p138, %p139
    %p141 = scmp.ne.s32.totalorder %s133, %s135
    %p142 = scmp.eq.s32.totalorder %s20, 1
    %p143 = por %p141, %p142
    %p144 = scmp.ne.s32.totalorder %s135, %s136
    %p145 = scmp.eq.s32.totalorder %s20, 0
    %p146 = por %p144, %p145
    %p147 = scmp.ne.s32.totalorder %s135, %s136
    %p148 = scmp.eq.s32.totalorder %s21, 1
    %p149 = por %p147, %p148
    %p151 = scmp.ne.s32.totalorder %s136, %s150
    %p152 = scmp.eq.s32.totalorder %s21, 0
    %p153 = por %p151, %p152
    %s155 = sadd.s32 %s154, 1
    %p158 = scmp.eq.s32.totalorder %s15, 1
    %p159 = scmp.ne.s32.totalorder %s154, %s156
    %p160 = scmp.eq.s32.totalorder %s15, 0
    %p161 = por %p159, %p160
    %p162 = scmp.ne.s32.totalorder %s154, %s156
    %p163 = scmp.eq.s32.totalorder %s20, 1
    %p164 = por %p162, %p163
    %p165 = scmp.ne.s32.totalorder %s156, %s157
    %p166 = scmp.eq.s32.totalorder %s20, 0
    %p167 = por %p165, %p166
    %p168 = scmp.ne.s32.totalorder %s156, %s157
    %p169 = scmp.eq.s32.totalorder %s21, 1
    %p170 = por %p168, %p169
    %p172 = scmp.ne.s32.totalorder %s157, %s171
    %p173 = scmp.eq.s32.totalorder %s21, 0
    %p174 = por %p172, %p173
    %s175 = ssub.s32 %s15, %s22
    %p176 = scmp.eq.s32.totalorder %s175, 0
    %s178 = sadd.s32 %s177, 1
    %s179 = scalar_select %p176, %s177, %s178
    %p182 = pneg %p176
    %p183 = scmp.eq.s32.totalorder %s15, 1
    %p184 = por %p182, %p183
    %p185 = scmp.ne.s32.totalorder %s177, %s180
    %p186 = scmp.eq.s32.totalorder %s15, 0
    %p187 = por %p185, %p186
    %p188 = scmp.ne.s32.totalorder %s177, %s180
    %p189 = scmp.eq.s32.totalorder %s20, 1
    %p190 = por %p188, %p189
    %p191 = scmp.ne.s32.totalorder %s180, %s181
    %p192 = scmp.eq.s32.totalorder %s20, 0
    %p193 = por %p191, %p192
    %p194 = scmp.ne.s32.totalorder %s180, %s181
    %p195 = scmp.eq.s32.totalorder %s21, 1
    %p196 = por %p194, %p195
    %p198 = scmp.ne.s32.totalorder %s181, %s197
    %p199 = scmp.eq.s32.totalorder %s21, 0
    %p200 = por %p198, %p199
    %p201 = scmp.le.s32.totalorder 1, %s15
    %p202 = scmp.lt.s32.totalorder %s15, 3
    %p203 = pnand %p201, %p202
    %p204 = pneg %p203
    // Predicated region
    $region9: #{tpu_custom_call.1} parent=5 // pred_check
      _
    $region10: #{tpu_custom_call.1} parent=5 // pred_check_branch
      %206 = sbr.rel (%p203) target = $region12
    $region11: #{tpu_custom_call.1} parent=5 // pred_region
      %s207 = ssub.s32 %s15, 1
      // Predicated region
      $region13: #{tpu_custom_call.1} parent=11 // pred_check
        %p208 = pneg %p62
      $region14: #{tpu_custom_call.1} parent=11 // pred_check_branch
        %210 = sbr.rel (%p208) target = $region16
      $region15: #{tpu_custom_call.1} parent=11 // pred_region
        _
      $region16: #{tpu_custom_call.1} parent=11 // pred_fallthru
        _
      // Predicated region
      $region17: #{tpu_custom_call.1} parent=11 // pred_check
        %p211 = pneg %p83
      $region18: #{tpu_custom_call.1} parent=11 // pred_check_branch
        %213 = sbr.rel (%p211) target = $region20
      $region19: #{tpu_custom_call.1} parent=11 // pred_region
        _
      $region20: #{tpu_custom_call.1} parent=11 // pred_fallthru
        _
      // Predicated region
      $region21: #{tpu_custom_call.1} parent=11 // pred_check
        %p214 = pneg %p104
      $region22: #{tpu_custom_call.1} parent=11 // pred_check_branch
        %216 = sbr.rel (%p214) target = $region24
      $region23: #{tpu_custom_call.1} parent=11 // pred_region
        _
      $region24: #{tpu_custom_call.1} parent=11 // pred_fallthru
        _
      // Predicated region
      $region25: #{tpu_custom_call.1} parent=11 // pred_check
        %p217 = pneg %p125
      $region26: #{tpu_custom_call.1} parent=11 // pred_check_branch
        %219 = sbr.rel (%p217) target = $region28
      $region27: #{tpu_custom_call.1} parent=11 // pred_region
        _
      $region28: #{tpu_custom_call.1} parent=11 // pred_fallthru
        _
      // Predicated region
      $region29: #{tpu_custom_call.1} parent=11 // pred_check
        %p220 = pneg %p146
      $region30: #{tpu_custom_call.1} parent=11 // pred_check_branch
        %222 = sbr.rel (%p220) target = $region32
      $region31: #{tpu_custom_call.1} parent=11 // pred_region
        _
      $region32: #{tpu_custom_call.1} parent=11 // pred_fallthru
        _
      // Predicated region
      $region33: #{tpu_custom_call.1} parent=11 // pred_check
        %p223 = pneg %p167
      $region34: #{tpu_custom_call.1} parent=11 // pred_check_branch
        %225 = sbr.rel (%p223) target = $region36
      $region35: #{tpu_custom_call.1} parent=11 // pred_region
        _
      $region36: #{tpu_custom_call.1} parent=11 // pred_fallthru
        _
    $region12: #{tpu_custom_call.1} parent=5 // pred_fallthru
      _
    %p226 = scmp.lt.s32.totalorder %s15, 2
    // Predicated region
    $region37: #{tpu_custom_call.1} parent=5 // pred_check
      %p227 = pneg %p226
    $region38: #{tpu_custom_call.1} parent=5 // pred_check_branch
      %229 = sbr.rel (%p227) target = $region40
    $region39: #{tpu_custom_call.1} parent=5 // pred_region
      // Predicated region
      $region41: #{tpu_custom_call.1} parent=39 // pred_check
        %p230 = pneg %p35
      $region42: #{tpu_custom_call.1} parent=39 // pred_check_branch
        %232 = sbr.rel (%p230) target = $region44
      $region43: #{tpu_custom_call.1} parent=39 // pred_region
        %s233 = smul.u32 4, %s15
        %p234 = scmp.lt.s32.totalorder %s233, 7
        %s235 = scalar_select %p234, %s233, 7
        %s236 = smul.addr %s235, 8
        %s237 = scalar_lea.vmem %s0, %s236
        %s238 = smul.u32 4, %s15
      $region44: #{tpu_custom_call.1} parent=39 // pred_fallthru
        _
    $region40: #{tpu_custom_call.1} parent=5 // pred_fallthru
      _
    %p239 = scmp.le.s32.totalorder 1, %s15
    %p240 = scmp.lt.s32.totalorder %s15, 3
    %p241 = pnand %p239, %p240
    %p242 = pneg %p241
    // Predicated region
    $region45: #{tpu_custom_call.1} parent=5 // pred_check
      _
    $region46: #{tpu_custom_call.1} parent=5 // pred_check_branch
      %244 = sbr.rel (%p241) target = $region48
    $region47: #{tpu_custom_call.1} parent=5 // pred_region
      %s245 = ssub.s32 %s15, 1
      %s246 = smul.u32 4, %s20
      %p247 = scmp.lt.s32.totalorder %s246, 7
      %s248 = scalar_select %p247, %s246, 7
      %s249 = smul.addr %s248, 8
      %s250 = scalar_lea.vmem %s0, %s249
      %p251 = pneg %p41
      %p252 = pneg %p38
      %p253 = pneg %p62
      %p254 = pneg %p59
      %p255 = pneg %p83
      %p256 = pneg %p80
      %p257 = pneg %p104
      %p258 = pneg %p101
      %p259 = pneg %p125
      %p260 = pneg %p122
      %p261 = pneg %p146
      %p262 = pneg %p143
      %p263 = pneg %p167
      %p264 = pneg %p164
      %p265 = pneg %p193
      %p266 = pneg %p190
      %s267 = smul.u32 4, %s20
      %p268 = scmp.lt.s32.totalorder %s267, 7
      %s269 = scalar_select %p268, %s267, 7
      %s270 = smul.addr %s269, 8
      %s271 = scalar_lea.vmem %s7, %s270
      %s272 = smul.u32 4, %s20
      %p273 = scmp.lt.s32.totalorder %s272, 7
      %s274 = scalar_select %p273, %s272, 7
      %s275 = smul.addr %s274, 8
      %s276 = scalar_lea.vmem %s0, %s275
      %s277 = smul.u32 4, %s20
      %s278 = smul.u32 4, %s20
      %p279 = scmp.lt.s32.totalorder %s278, 7
      %s280 = scalar_select %p279, %s278, 7
      %s281 = smul.addr %s280, 8
      %s282 = scalar_lea.vmem %s7, %s281
      %s283 = smul.u32 4, %s20
      %v285 = vld [vmem:[%s276] sm:$0xff]
      %v286 = vld [vmem:[%s276 + $0x8] sm:$0xff]
      %v287 = vld [vmem:[%s276 + $0x10] sm:$0xff]
      %v288 = vld [vmem:[%s276 + $0x18] sm:$0xff]
      %v289 = vpack.c.bf16 %v286, %v285
      %v290 = vpack.c.bf16 %v288, %v287
      %v291 = vld [vmem:[%s1] sm:$0xf]
      %v292 = vld [vmem:[%s1 + $0x4] sm:$0xf]
      %v293 = vld [vmem:[%s1 + $0x8] sm:$0xf]
      %v294 = vld [vmem:[%s1 + $0xc] sm:$0xf]
      %v295 = vld [vmem:[%s2] sm:$0x1]
      %v297 = vlaneseq
      %v298 = vshrl.u32 %v297, 7
      %v299 = vsub.s32 0, %v298
      %v300 = vrot.slane %v295, %v299
      %v306 = vunpack.c.l.b16 %v291
      %v307 = vunpack.c.l.b16 %v292
      %v308 = vunpack.c.l.b16 %v293
      %v309 = vunpack.c.l.b16 %v294
      %v310 = vpack.c.b16 %v307, %v306
      %v311 = vpack.c.b16 %v309, %v308
      %vm314 = vcmask 261120
      %v316 = vsel %vm314, %v289, 0
      %v319 = vsel %vm314, %v290, 0
      %321 = vmatprep.subr.bf16.mxu0 0
      %322 = vmatpush1.bf16.msra.mxu0 0
      %323 = vmatprep.subr.bf16.mxu0 0
      %324 = vmatpush1.bf16.msra.mxu0 0
      %325 = vmatprep.subr.bf16.mxu0 0
      %326 = vmatpush1.bf16.msra.mxu0 0
      %327 = vmatprep.subr.bf16.mxu0 0
      %328 = vmatpush1.bf16.msra.mxu0 0
      %329 = vmatprep.subr.bf16.mxu0 0
      %330 = vmatpush1.bf16.msra.mxu0 0
      %331 = vmatprep.subr.bf16.mxu0 0
      %332 = vmatpush1.bf16.msra.mxu0 0
      %333 = vmatprep.subr.bf16.mxu0 0
      %334 = vmatpush1.bf16.msra.mxu0 %v311
      %335 = vmatprep.subr.bf16.mxu0 0
      %336 = vmatpush1.bf16.msra.mxu0 %v310
      %337 = vmatprep.subr.bf16.mxu0 0
      %338 = vmatpush2.bf16.msra.mxu0 0
      %339 = vmatprep.subr.bf16.mxu0 0
      %340 = vmatpush2.bf16.msra.mxu0 0
      %341 = vmatprep.subr.bf16.mxu0 0
      %342 = vmatpush2.bf16.msra.mxu0 0
      %343 = vmatprep.subr.bf16.mxu0 0
      %344 = vmatpush2.bf16.msra.mxu0 0
      %345 = vmatprep.subr.bf16.mxu0 0
      %346 = vmatpush2.bf16.msra.mxu0 0
      %347 = vmatprep.subr.bf16.mxu0 0
      %348 = vmatpush2.bf16.msra.mxu0 0
      %349 = vmatprep.subr.bf16.mxu0 0
      %350 = vmatpush2.bf16.msra.mxu0 0
      %351 = vmatprep.subr.bf16.mxu0 0
      %352 = vmatpush2.bf16.msra.mxu0 0
      %353 = vmatprep.mubr.bf16.mxu0 0
      %354 = vmatmul.mubr.bf16.gmra.mxu0 %v316
      %v355 = vpop.f32.mrf.mxu0
      %v356 = vadd.f32 %v300, %v355
      %v357 = vpop.f32.mrf.mxu0
      %v358 = vpop.f32.mrf.mxu0
      %v359 = vadd.f32 %v300, %v358
      %v360 = vpop.f32.mrf.mxu0
      %361 = vmatprep.mubr.bf16.mxu0 0
      %362 = vmatmul.mubr.bf16.gmra.mxu0 %v319
      %v363 = vpop.f32.mrf.mxu0
      %v364 = vadd.f32 %v300, %v363
      %v365 = vpop.f32.mrf.mxu0
      %v366 = vpop.f32.mrf.mxu0
      %v367 = vadd.f32 %v300, %v366
      %v368 = vpop.f32.mrf.mxu0
      %369 = vdwg.mxu0
      %v370 = vmax.f32 %v356, 0.0
      %v371 = vmax.f32 %v359, 0.0
      %v372 = vmax.f32 %v364, 0.0
      %v373 = vmax.f32 %v367, 0.0
      %v374 = vpack.c.bf16 %v371, %v370
      %v375 = vpack.c.bf16 %v373, %v372
      %v376 = vld [vmem:[%s3] sm:$0xf]
      %v377 = vld [vmem:[%s3 + $0x4] sm:$0xf]
      %v378 = vld [vmem:[%s3 + $0x8] sm:$0xf]
      %v379 = vld [vmem:[%s3 + $0xc] sm:$0xf]
      %v380 = vld [vmem:[%s3 + $0x10] sm:$0xf]
      %v381 = vld [vmem:[%s3 + $0x14] sm:$0xf]
      %v382 = vld [vmem:[%s3 + $0x18] sm:$0xf]
      %v383 = vld [vmem:[%s3 + $0x1c] sm:$0xf]
      %v384 = vld [vmem:[%s3 + $0x20] sm:$0xf]
      %v385 = vld [vmem:[%s3 + $0x24] sm:$0xf]
      %v386 = vld [vmem:[%s3 + $0x28] sm:$0xf]
      %v387 = vld [vmem:[%s3 + $0x2c] sm:$0xf]
      %v388 = vld [vmem:[%s3 + $0x30] sm:$0xf]
      %v389 = vld [vmem:[%s3 + $0x34] sm:$0xf]
      %v390 = vld [vmem:[%s3 + $0x38] sm:$0xf]
      %v391 = vld [vmem:[%s3 + $0x3c] sm:$0xf]
      %v392 = vld [vmem:[%s4] sm:$0x1]
      %v394 = vlaneseq
      %v395 = vshrl.u32 %v394, 7
      %v396 = vsub.s32 0, %v395
      %v397 = vrot.slane %v392, %v396
      %v415 = vunpack.c.l.b16 %v376
      %v416 = vunpack.c.l.b16 %v377
      %v417 = vunpack.c.l.b16 %v378
      %v418 = vunpack.c.l.b16 %v379
      %v419 = vunpack.c.l.b16 %v380
      %v420 = vunpack.c.l.b16 %v381
      %v421 = vunpack.c.l.b16 %v382
      %v422 = vunpack.c.l.b16 %v383
      %v423 = vunpack.c.l.b16 %v384
      %v424 = vunpack.c.l.b16 %v385
      %v425 = vunpack.c.l.b16 %v386
      %v426 = vunpack.c.l.b16 %v387
      %v427 = vunpack.c.l.b16 %v388
      %v428 = vunpack.c.l.b16 %v389
      %v429 = vunpack.c.l.b16 %v390
      %v430 = vunpack.c.l.b16 %v391
      %v431 = vpack.c.b16 %v416, %v415
      %v432 = vpack.c.b16 %v418, %v417
      %v433 = vpack.c.b16 %v420, %v419
      %v434 = vpack.c.b16 %v422, %v421
      %v435 = vpack.c.b16 %v424, %v423
      %v436 = vpack.c.b16 %v426, %v425
      %v437 = vpack.c.b16 %v428, %v427
      %v438 = vpack.c.b16 %v430, %v429
      %447 = vmatprep.subr.bf16.mxu0 0
      %448 = vmatpush1.bf16.msra.mxu0 %v438
      %449 = vmatprep.subr.bf16.mxu0 0
      %450 = vmatpush1.bf16.msra.mxu0 %v437
      %451 = vmatprep.subr.bf16.mxu0 0
      %452 = vmatpush1.bf16.msra.mxu0 %v436
      %453 = vmatprep.subr.bf16.mxu0 0
      %454 = vmatpush1.bf16.msra.mxu0 %v435
      %455 = vmatprep.subr.bf16.mxu0 0
      %456 = vmatpush1.bf16.msra.mxu0 %v434
      %457 = vmatprep.subr.bf16.mxu0 0
      %458 = vmatpush1.bf16.msra.mxu0 %v433
      %459 = vmatprep.subr.bf16.mxu0 0
      %460 = vmatpush1.bf16.msra.mxu0 %v432
      %461 = vmatprep.subr.bf16.mxu0 0
      %462 = vmatpush1.bf16.msra.mxu0 %v431
      %463 = vmatprep.subr.bf16.mxu0 0
      %464 = vmatpush2.bf16.msra.mxu0 0
      %465 = vmatprep.subr.bf16.mxu0 0
      %466 = vmatpush2.bf16.msra.mxu0 0
      %467 = vmatprep.subr.bf16.mxu0 0
      %468 = vmatpush2.bf16.msra.mxu0 0
      %469 = vmatprep.subr.bf16.mxu0 0
      %470 = vmatpush2.bf16.msra.mxu0 0
      %471 = vmatprep.subr.bf16.mxu0 0
      %472 = vmatpush2.bf16.msra.mxu0 0
      %473 = vmatprep.subr.bf16.mxu0 0
      %474 = vmatpush2.bf16.msra.mxu0 0
      %475 = vmatprep.subr.bf16.mxu0 0
      %476 = vmatpush2.bf16.msra.mxu0 0
      %477 = vmatprep.subr.bf16.mxu0 0
      %478 = vmatpush2.bf16.msra.mxu0 0
      %479 = vmatprep.mubr.bf16.mxu0 0
      %480 = vmatmul.mubr.bf16.gmra.mxu0 %v374
      %v481 = vpop.f32.mrf.mxu0
      %v482 = vadd.f32 %v397, %v481
      %v483 = vpop.f32.mrf.mxu0
      %v484 = vpop.f32.mrf.mxu0
      %v485 = vadd.f32 %v397, %v484
      %v486 = vpop.f32.mrf.mxu0
      %487 = vmatprep.mubr.bf16.mxu0 0
      %488 = vmatmul.mubr.bf16.gmra.mxu0 %v375
      %v489 = vpop.f32.mrf.mxu0
      %v490 = vadd.f32 %v397, %v489
      %v491 = vpop.f32.mrf.mxu0
      %v492 = vpop.f32.mrf.mxu0
      %v493 = vadd.f32 %v397, %v492
      %v494 = vpop.f32.mrf.mxu0
      %495 = vdwg.mxu0
      %v496 = vmax.f32 %v482, 0.0
      %v497 = vmax.f32 %v485, 0.0
      %v498 = vmax.f32 %v490, 0.0
      %v499 = vmax.f32 %v493, 0.0
      %v500 = vld [vmem:[%s5] sm:$0x1]
      %v502 = vlaneseq
      %v503 = vshrl.u32 %v502, 7
      %v504 = vsub.s32 0, %v503
      %v505 = vrot.slane %v500, %v504
      %v507 = vmul.f32 %v496, %v505
      %v508 = vmul.f32 %v497, %v505
      %v509 = vmul.f32 %v498, %v505
      %v510 = vmul.f32 %v499, %v505
      %511 = vadd.xlane.f32.xlu0 %v507
      %v512 = vpop.xlane.xlu0 %511
      %513 = vadd.xlane.f32.xlu0 %v508
      %v514 = vpop.xlane.xlu0 %513
      %515 = vadd.xlane.f32.xlu0 %v509
      %v516 = vpop.xlane.xlu0 %515
      %517 = vadd.xlane.f32.xlu0 %v510
      %v518 = vpop.xlane.xlu0 %517
      %v519 = vld [vmem:[#allocation2] sm:$0x1]
      %v521 = vlaneseq
      %v522 = vshrl.u32 %v521, 7
      %v523 = vsub.s32 0, %v522
      %v524 = vrot.slane %v519, %v523
      %v526 = vadd.f32 %v512, %v524
      %v527 = vadd.f32 %v514, %v524
      %v528 = vadd.f32 %v516, %v524
      %v529 = vadd.f32 %v518, %v524
      %v530 = vxor.u32 %v526, 2147483648
      %v531 = vxor.u32 %v527, 2147483648
      %v532 = vxor.u32 %v528, 2147483648
      %v533 = vxor.u32 %v529, 2147483648
      %v534 = vmul.f32 %v530, 1.442695
      %v535 = vpow.pop %v534
      %v536 = vmul.f32 %v531, 1.442695
      %v537 = vpow.pop %v536
      %v538 = vmul.f32 %v532, 1.442695
      %v539 = vpow.pop %v538
      %v540 = vmul.f32 %v533, 1.442695
      %v541 = vpow.pop %v540
      %v542 = vadd.f32 %v535, 1.0
      %v543 = vadd.f32 %v537, 1.0
      %v544 = vadd.f32 %v539, 1.0
      %v545 = vadd.f32 %v541, 1.0
      %v546 = vrcp.pop %v542
      %v547 = vmul.f32 1.0, %v546
      %v548 = vrcp.pop %v543
      %v549 = vmul.f32 1.0, %v548
      %v550 = vrcp.pop %v544
      %v551 = vmul.f32 1.0, %v550
      %v552 = vrcp.pop %v545
      %v553 = vmul.f32 1.0, %v552
      %vm554 = vcmask 7168
      %555 = vst.msk [vmem:[%s282] sm:$0xff] %vm554, %v547
      %556 = vst.msk [vmem:[%s282 + $0x8] sm:$0xff] %vm554, %v549
      %557 = vst.msk [vmem:[%s282 + $0x10] sm:$0xff] %vm554, %v551
      %558 = vst.msk [vmem:[%s282 + $0x18] sm:$0xff] %vm554, %v553
      %s559 = smul.u32 4, %s20
      %p560 = scmp.lt.s32.totalorder %s559, 7
      %s561 = scalar_select %p560, %s559, 7
      %s562 = smul.addr %s561, 8
      %s563 = scalar_lea.vmem %s7, %s562
      // Predicated region
      $region49: #{tpu_custom_call.1} parent=47 // pred_check
        %p564 = pneg %p190
      $region50: #{tpu_custom_call.1} parent=47 // pred_check_branch
        %566 = sbr.rel (%p564) target = $region52
      $region51: #{tpu_custom_call.1} parent=47 // pred_region
        %s567 = smul.u32 4, %s20
      $region52: #{tpu_custom_call.1} parent=47 // pred_fallthru
        _
    $region48: #{tpu_custom_call.1} parent=5 // pred_fallthru
      _
    %p568 = scmp.le.s32.totalorder 2, %s15
    // Predicated region
    $region53: #{tpu_custom_call.1} parent=5 // pred_check
      %p569 = pneg %p568
    $region54: #{tpu_custom_call.1} parent=5 // pred_check_branch
      %571 = sbr.rel (%p569) target = $region56
    $region55: #{tpu_custom_call.1} parent=5 // pred_region
      %s572 = ssub.s32 %s15, 2
      // Predicated region
      $region57: #{tpu_custom_call.1} parent=55 // pred_check
        %p573 = pneg %p196
      $region58: #{tpu_custom_call.1} parent=55 // pred_check_branch
        %575 = sbr.rel (%p573) target = $region60
      $region59: #{tpu_custom_call.1} parent=55 // pred_region
        %s576 = smul.u32 4, %s21
        %p577 = scmp.lt.s32.totalorder %s576, 7
        %s578 = scalar_select %p577, %s576, 7
        %s579 = smul.addr %s578, 8
        %s580 = scalar_lea.vmem %s7, %s579
      $region60: #{tpu_custom_call.1} parent=55 // pred_fallthru
        _
    $region56: #{tpu_custom_call.1} parent=5 // pred_fallthru
      _
  $region6: #{tpu_custom_call.1} parent=0 // loop_footer
    %s19 = sadd.s32 1, %s15
  $region7: #{tpu_custom_call.1} parent=0 // loop_footer_branch
    %14 = sbr.rel target = $region3
  $region8: #{tpu_custom_call.1} parent=0 // loop_exit
    _

</llo_original>
